<compile_context>
chip_gen: v7x
topology: tpu7x:2x2x1
jax: 0.10.0
libtpu: 0.0.40
codegen_flags: <defaults>
</compile_context>

<pallas_src>
import jax
import jax.numpy as jnp
from jax.experimental import pallas as pl
from jax.experimental.pallas import tpu as pltpu

_LANE = 128            # TPU vreg lane width
_SUBLANE = 8           # TPU vreg sublane count (f32)
_MAX_COLS = 4096       # cap on lane-dense last dim (16 KiB/row in f32)
_TARGET_TILE_BYTES = 4 * 1024 * 1024   # per-buffer tile budget (~4 MiB)


def _identity_kernel(x_ref, o_ref):
    # Pure pass-through: BaseModel.forward defines no computation.
    o_ref[...] = x_ref[...]


def _lane_dense_shape(total):
    """Factor `total` as (rows, cols) with cols a large multiple of 128."""
    if total % _LANE != 0:
        return None
    cols = _LANE
    while cols * 2 <= _MAX_COLS and total % (cols * 2) == 0:
        cols *= 2
    return total // cols, cols


def _choose_tile_rows(rows, cols, itemsize):
    """Largest multiple-of-8 row tile that keeps one buffer ~<= 4 MiB."""
    row_bytes = max(1, cols * itemsize)
    tr = (_TARGET_TILE_BYTES // row_bytes) // _SUBLANE * _SUBLANE
    tr = max(_SUBLANE, tr)
    if rows <= tr:
        # Single block covering the full array (full-dim block is always legal).
        return rows
    return tr


def _passthrough_2d(x2d):
    """Run an (R, C) slab through a tiled Pallas identity kernel."""
    R, C = x2d.shape
    tr = _choose_tile_rows(R, C, x2d.dtype.itemsize)
    grid = (pl.cdiv(R, tr),)   # Pallas masks the ragged last block, if any.
    return pl.pallas_call(
        _identity_kernel,
        out_shape=jax.ShapeDtypeStruct((R, C), x2d.dtype),
        grid_spec=pltpu.PrefetchScalarGridSpec(
            num_scalar_prefetch=0,
            grid=grid,
            in_specs=[pl.BlockSpec((tr, C), lambda i: (i, 0))],
            out_specs=pl.BlockSpec((tr, C), lambda i: (i, 0)),
        ),
        compiler_params=pltpu.CompilerParams(
            dimension_semantics=("parallel",),
            vmem_limit_bytes=32 << 20,
        ),
    )(x2d)


@jax.jit
def pallas_identity(x):
    """Identity copy of `x` routed through the Pallas kernel, any shape."""
    x = jnp.asarray(x)
    total = x.size
    shape2d = _lane_dense_shape(total)
    if shape2d is None:
        # Fallback for totals not divisible by 128: keep the trailing dim as
        # the lane axis (full-dim last block is legal for any width).
        shape2d = (total // x.shape[-1], x.shape[-1])
    y2d = _passthrough_2d(x.reshape(shape2d))
    return y2d.reshape(x.shape)


class BaseModelPallas:
    """JAX/Pallas analogue of the PyTorch BaseModel scaffold.

    Only the fields relevant to forward-pass semantics are kept; the training
    loop / logging machinery of the original class is host-side Python with no
    kernel equivalent.
    """

    def __init__(self):
        self.init = True
        self.epoch = 0
        self.dropout = 0
        self.final_dropout = 0
        self.ann_rate = 0

    def forward(self, *inputs):
        """Matches PyTorch BaseModel.forward exactly: abstract, returns None.

        Per the performance review, no device work is launched here: the
        reference discards everything, so any kernel call would be dead
        HBM traffic.  Subclasses reimplement forward with real compute
        (e.g. via `pallas_identity`-style pallas_call wrappers).
        """
        return None

    def __call__(self, *inputs):
        return self.forward(*inputs)


if __name__ == "__main__":
    key = jax.random.PRNGKey(0)
    # Small NCHW input consistent with an image network built on BaseModel.
    x = jax.random.normal(key, (2, 4, 16, 16), dtype=jnp.float32)

    # Run the Pallas identity kernel once and verify it is a faithful copy.
    y = jax.block_until_ready(pallas_identity(x))
    assert y.shape == x.shape and y.dtype == x.dtype
    assert jnp.array_equal(y, x), "identity kernel mismatch"

    # Exercise the module wrapper: semantics match PyTorch (forward -> None).
    model = BaseModelPallas()
    out = model(x)
    assert out is None

    print("KERNEL_OK")
</pallas_src>

<mosaic_0001>
module attributes {stable_mosaic.version = 11 : i64} {
  func.func @_identity_kernel(%arg0: i32, %arg1: memref<1x2048xf32, #tpu.memory_space<vmem>>, %arg2: memref<1x2048xf32, #tpu.memory_space<vmem>>) attributes {dimension_semantics = [#tpu.dimension_semantics<parallel>], iteration_bounds = array<i64: 1>, scalar_prefetch = 0 : i64, scratch_operands = 0 : i64, tpu.core_type = #tpu.core_type<tc>, window_params = [{transform_indices = @transform_0, window_bounds = array<i64: 1, 2048>}, {transform_indices = @transform_1, window_bounds = array<i64: 1, 2048>}]} {
    %c0 = arith.constant 0 : index
    %c0_0 = arith.constant 0 : index
    %0 = vector.load %arg1[%c0, %c0_0] : memref<1x2048xf32, #tpu.memory_space<vmem>>, vector<1x2048xf32>
    %c0_1 = arith.constant 0 : index
    %c0_2 = arith.constant 0 : index
    %1 = vector.load %arg2[%c0_1, %c0_2] : memref<1x2048xf32, #tpu.memory_space<vmem>>, vector<1x2048xf32>
    tpu.vector_store %arg2[%c0_1, %c0_2], %0 {strides = array<i32>} : memref<1x2048xf32, #tpu.memory_space<vmem>>, vector<1x2048xf32>,
    return
  }
  func.func @transform_0(%arg0: i32) -> (i32, i32) {
    %c0_i32 = arith.constant 0 : i32
    %c0_i32_0 = arith.constant 0 : i32
    return %arg0, %c0_i32 : i32, i32
  }
  func.func @transform_1(%arg0: i32) -> (i32, i32) {
    %c0_i32 = arith.constant 0 : i32
    %c0_i32_0 = arith.constant 0 : i32
    return %arg0, %c0_i32 : i32, i32
  }
}

</mosaic_0001>

<llo_original>
// kernel: pallas_identity.1
$region0: #{pallas_identity.1}
  #allocation0 [shape = 'u32[]', space=smem, size = 0x4, offset = 0x4, fixed_abs, tag = 'smem constant byte address 0x4 - core index']
  #allocation1 [shape = 'u32[144,128]{1,0:T(1,128)}', space=vmem, size = 0x12000, scoped, tag = 'internal scratch']
  %s0 = inlined_call_operand.vmem [shape: f32[1,2048], index: 0, kind: input, shape index: {}]
  %s1 = inlined_call_operand.vmem [shape: f32[1,2048], index: 1, kind: output, shape index: {}]
  %s2 = sld [smem:[#allocation0]]
  $region14: #{pallas_identity.1} parent=0
    _
  %s4 = ssub.s32 1, %s2
  %s5 = scalar_select 0, %s4, %s2
  // Predicated region
  $region2: #{pallas_identity.1} parent=0 // pred_check
    _
  $region3: #{pallas_identity.1} parent=0 // pred_check_branch
    %7 = sbr.rel (0) target = $region5
  $region4: #{pallas_identity.1} parent=0 // pred_region
    _
  $region5: #{pallas_identity.1} parent=0 // pred_fallthru
    _
  %v8 = vld [vmem:[%s0] sm:$0xff]
  %v9 = vld [vmem:[%s0 + $0x8] sm:$0xff]
  %10 = vst [vmem:[%s1] sm:$0xff] %v8
  %11 = vst [vmem:[%s1 + $0x8] sm:$0xff] %v9
  // Predicated region
  $region6: #{pallas_identity.1} parent=0 // pred_check
    _
  $region7: #{pallas_identity.1} parent=0 // pred_check_branch
    %13 = sbr.rel (0) target = $region9
  $region8: #{pallas_identity.1} parent=0 // pred_region
    _
  $region9: #{pallas_identity.1} parent=0 // pred_fallthru
    _
  // Predicated region
  $region10: #{pallas_identity.1} parent=0 // pred_check
    _
  $region11: #{pallas_identity.1} parent=0 // pred_check_branch
    %15 = sbr.rel (0) target = $region13
  $region12: #{pallas_identity.1} parent=0 // pred_region
    _
  $region13: #{pallas_identity.1} parent=0 // pred_fallthru
    _

</llo_original>
